<compile_context>
chip_gen: v5e
topology: v5e:2x2
jax: 0.10.0
libtpu: 0.0.40
codegen_flags: <defaults>
</compile_context>

<pallas_src>
import functools

import jax
import jax.numpy as jnp
from jax import lax
from jax.experimental import pallas as pl
from jax.experimental.pallas import tpu as pltpu

K = 3  # Conv2d(2, 1, kernel_size=3, padding=1, bias=False)


def _spatial_attn3d_kernel(W, wm_ref, x_ref, o_ref):
    """One (Bt, C, D, H*W) block per grid step.

    wm_ref : VMEM (K*K, 2*Bt, HW)  pre-weighted zero-padding masks per tap;
             rows [0:Bt] = avg channel weight, rows [Bt:2Bt] = max channel.
    x_ref  : VMEM (Bt, C, D, HW)   lane-dense view of the input.
    o_ref  : VMEM (Bt, C, D, HW)
    """
    pad = K // 2
    x = x_ref[...].astype(jnp.float32)                    # accumulate in f32
    Bt, C, D, HW = x.shape

    # torch.mean(x, 1) then mean over dim=2  ->  mean over (C, D)
    # torch.max(x, 1)  then mean over dim=2  ->  max over C, mean over D
    avg = jnp.sum(jnp.sum(x, axis=1), axis=1) * (1.0 / (C * D))    # (Bt, HW)
    mx = jnp.max(x, axis=1)                                        # (Bt, D, HW)
    mxm = jnp.sum(mx, axis=1) * (1.0 / D)                          # (Bt, HW)

    # Both conv input channels stacked on the sublane axis: one roll per tap.
    maps = jnp.concatenate([avg, mxm], axis=0)                     # (2*Bt, HW)

    acc = jnp.zeros((2 * Bt, HW), jnp.float32)
    t = 0
    for di in range(-pad, pad + 1):
        for dj in range(-pad, pad + 1):
            shift = (-(di * W + dj)) % HW
            r = maps if shift == 0 else pltpu.roll(maps, shift=shift, axis=1)
            acc = acc + r * wm_ref[t]          # pre-weighted + edge-masked tap
            t += 1

    conv = acc[:Bt] + acc[Bt:]                                     # (Bt, HW)
    scale = jax.nn.sigmoid(conv)                                   # (Bt, HW)
    # Single broadcast per block (not per C slab): x * sigmoid(out).unsqueeze(2)
    o_ref[...] = (x * scale[:, None, None, :]).astype(o_ref.dtype)


def _pick_batch_tile(B, per_batch_bytes, target_bytes=2 << 20):
    """Largest Bt dividing B with block ~target_bytes, keeping >=2 grid steps."""
    bt = max(1, min(B, target_bytes // max(1, per_batch_bytes)))
    if B >= 2:                       # keep grid >= 2 so v7x's two TCs both work
        bt = max(1, min(bt, B // 2))
    while B % bt:                    # divisor of B: no ragged last block
        bt -= 1
    return bt


def _weighted_edge_masks(weight, H, W, bt):
    """(K*K, 2*bt, HW): per-tap conv weight x zero-padding validity mask."""
    pad = K // 2
    HW = H * W
    ff = jnp.arange(HW, dtype=jnp.int32)
    hh = ff // W
    ww = ff - hh * W
    w = weight.astype(jnp.float32)
    rows = []
    for di in range(-pad, pad + 1):
        for dj in range(-pad, pad + 1):
            ki, kj = di + pad, dj + pad
            valid = ((hh + di >= 0) & (hh + di < H) &
                     (ww + dj >= 0) & (ww + dj < W)).astype(jnp.float32)
            rows.append(jnp.concatenate([
                jnp.broadcast_to(w[0, 0, ki, kj] * valid, (bt, HW)),
                jnp.broadcast_to(w[0, 1, ki, kj] * valid, (bt, HW)),
            ], axis=0))
    return jnp.stack(rows, axis=0)   # (K*K, 2*bt, HW)


def optimized_spatial_attention_3d(x, weight):
    """x: (B, C, D, H, W); weight: (1, 2, K, K) Conv2d weight (bias=False)."""
    B, C, D, H, W = x.shape
    HW = H * W
    x_flat = x.reshape(B, C, D, HW)                    # lane-dense minor dim

    per_batch_bytes = C * D * HW * x.dtype.itemsize
    Bt = _pick_batch_tile(B, per_batch_bytes)
    grid = B // Bt

    wm = _weighted_edge_masks(weight, H, W, Bt)        # (K*K, 2*Bt, HW)

    block_bytes = Bt * per_batch_bytes
    mask_bytes = int(wm.size) * 4
    need = 4 * block_bytes + 2 * mask_bytes + (8 << 20)   # 2x in + 2x out + masks
    try:
        vmem_cap = int(pltpu.get_tpu_info().vmem_capacity_bytes)
    except Exception:
        vmem_cap = 64 * 1024 * 1024                    # smallest of v5e/v6e/v7x
    vmem_limit = int(min(int(0.85 * vmem_cap), max(need, 32 << 20)))

    kernel = functools.partial(_spatial_attn3d_kernel, W)
    # TODO(synk): for very large C*D*HW blocks, split into a reduce+conv call
    # producing (B, HW) scales and a separately tiled elementwise apply call.
    out = pl.pallas_call(
        kernel,
        out_shape=jax.ShapeDtypeStruct((B, C, D, HW), x.dtype),
        grid_spec=pl.GridSpec(
            grid=(grid,),
            in_specs=[
                pl.BlockSpec((K * K, 2 * Bt, HW), lambda b: (0, 0, 0)),  # resident
                pl.BlockSpec((Bt, C, D, HW), lambda b: (b, 0, 0, 0)),
            ],
            out_specs=pl.BlockSpec((Bt, C, D, HW), lambda b: (b, 0, 0, 0)),
        ),
        compiler_params=pltpu.CompilerParams(
            dimension_semantics=("parallel",),
            vmem_limit_bytes=vmem_limit),
    )(wm, x_flat)
    return out.reshape(B, C, D, H, W)


def reference(x, weight):
    """Pure-JAX reference mirroring the PyTorch forward exactly."""
    avg_out = jnp.mean(x, axis=1, keepdims=True)          # (B,1,D,H,W)
    max_out = jnp.max(x, axis=1, keepdims=True)           # (B,1,D,H,W)
    out = jnp.concatenate([avg_out, max_out], axis=1)     # (B,2,D,H,W)
    out = jnp.mean(out, axis=2)                           # (B,2,H,W)
    out = lax.conv_general_dilated(
        out, weight, window_strides=(1, 1),
        padding=[(K // 2, K // 2), (K // 2, K // 2)],
        dimension_numbers=("NCHW", "OIHW", "NCHW"))       # (B,1,H,W)
    return x * jax.nn.sigmoid(out)[:, :, None, :, :]      # (B,C,D,H,W)


if __name__ == "__main__":
    key = jax.random.PRNGKey(0)
    kx, kw = jax.random.split(key)

    B, C, D, H, W = 2, 4, 8, 16, 16
    x = jax.random.normal(kx, (B, C, D, H, W), dtype=jnp.float32)
    # Deterministic synthetic Conv2d(2, 1, 3, padding=1, bias=False) weight.
    weight = 0.1 * jax.random.normal(kw, (1, 2, K, K), dtype=jnp.float32)

    out = optimized_spatial_attention_3d(x, weight)
    out = jax.block_until_ready(out)

    ref = reference(x, weight)
    assert out.shape == x.shape and out.dtype == x.dtype
    max_err = float(jnp.max(jnp.abs(out - ref)))
    assert jnp.allclose(out, ref, atol=1e-5, rtol=1e-5), f"max abs err {max_err}"

    print("KERNEL_OK")
</pallas_src>

<mosaic_0001>
module attributes {stable_mosaic.version = 11 : i64} {
  func.func @_spatial_attn3d_kernel(%arg0: i32, %arg1: memref<9x2x256xf32, #tpu.memory_space<vmem>>, %arg2: memref<1x4x8x256xf32, #tpu.memory_space<vmem>>, %arg3: memref<1x4x8x256xf32, #tpu.memory_space<vmem>>) attributes {dimension_semantics = [#tpu.dimension_semantics<parallel>], iteration_bounds = array<i64: 2>, scalar_prefetch = 0 : i64, scratch_operands = 0 : i64, tpu.core_type = #tpu.core_type<tc>, window_params = [{pipeline_mode = #tpu.pipeline_mode<synchronous>, transform_indices = @transform_0, window_bounds = array<i64: 9, 2, 256>}, {transform_indices = @transform_1, window_bounds = array<i64: 1, 4, 8, 256>}, {transform_indices = @transform_2, window_bounds = array<i64: 1, 4, 8, 256>}]} {
    %c0 = arith.constant 0 : index
    %c0_0 = arith.constant 0 : index
    %c0_1 = arith.constant 0 : index
    %c0_2 = arith.constant 0 : index
    %0 = vector.load %arg2[%c0, %c0_0, %c0_1, %c0_2] : memref<1x4x8x256xf32, #tpu.memory_space<vmem>>, vector<1x4x8x256xf32>
    %cst = arith.constant dense<0.000000e+00> : vector<1x8x256xf32>
    %1 = vector.multi_reduction <add>, %0, %cst [1] : vector<1x4x8x256xf32> to vector<1x8x256xf32>
    %cst_3 = arith.constant dense<0.000000e+00> : vector<1x256xf32>
    %2 = vector.multi_reduction <add>, %1, %cst_3 [1] : vector<1x8x256xf32> to vector<1x256xf32>
    %cst_4 = arith.constant 3.125000e-02 : f32
    %3 = vector.broadcast %cst_4 : f32 to vector<1x256xf32>
    %4 = arith.mulf %2, %3 : vector<1x256xf32>
    %cst_5 = arith.constant dense<0xFF800000> : vector<1x8x256xf32>
    %5 = vector.multi_reduction <maximumf>, %0, %cst_5 [1] : vector<1x4x8x256xf32> to vector<1x8x256xf32>
    %cst_6 = arith.constant dense<0.000000e+00> : vector<1x256xf32>
    %6 = vector.multi_reduction <add>, %5, %cst_6 [1] : vector<1x8x256xf32> to vector<1x256xf32>
    %cst_7 = arith.constant 1.250000e-01 : f32
    %7 = vector.broadcast %cst_7 : f32 to vector<1x256xf32>
    %8 = arith.mulf %6, %7 : vector<1x256xf32>
    %9 = tpu.concatenate %4, %8 in 0 : vector<1x256xf32>, vector<1x256xf32> -> vector<2x256xf32>
    %cst_8 = arith.constant 0.000000e+00 : f32
    %10 = vector.broadcast %cst_8 : f32 to vector<2x256xf32>
    %c17_i32 = arith.constant 17 : i32
    %11 = tpu.dynamic_rotate %9 by %c17_i32 dim 1 : vector<2x256xf32>, i32 -> vector<2x256xf32>
    %c0_9 = arith.constant 0 : index
    %c0_10 = arith.constant 0 : index
    %c0_11 = arith.constant 0 : index
    %12 = vector.load %arg1[%c0_9, %c0_10, %c0_11] : memref<9x2x256xf32, #tpu.memory_space<vmem>>, vector<1x2x256xf32>
    %13 = vector.shape_cast %12 : vector<1x2x256xf32> to vector<2x256xf32>
    %14 = arith.mulf %11, %13 : vector<2x256xf32>
    %15 = arith.addf %10, %14 : vector<2x256xf32>
    %c16_i32 = arith.constant 16 : i32
    %16 = tpu.dynamic_rotate %9 by %c16_i32 dim 1 : vector<2x256xf32>, i32 -> vector<2x256xf32>
    %c1 = arith.constant 1 : index
    %c0_12 = arith.constant 0 : index
    %c0_13 = arith.constant 0 : index
    %17 = vector.load %arg1[%c1, %c0_12, %c0_13] : memref<9x2x256xf32, #tpu.memory_space<vmem>>, vector<1x2x256xf32>
    %18 = vector.shape_cast %17 : vector<1x2x256xf32> to vector<2x256xf32>
    %19 = arith.mulf %16, %18 : vector<2x256xf32>
    %20 = arith.addf %15, %19 : vector<2x256xf32>
    %c15_i32 = arith.constant 15 : i32
    %21 = tpu.dynamic_rotate %9 by %c15_i32 dim 1 : vector<2x256xf32>, i32 -> vector<2x256xf32>
    %c2 = arith.constant 2 : index
    %c0_14 = arith.constant 0 : index
    %c0_15 = arith.constant 0 : index
    %22 = vector.load %arg1[%c2, %c0_14, %c0_15] : memref<9x2x256xf32, #tpu.memory_space<vmem>>, vector<1x2x256xf32>
    %23 = vector.shape_cast %22 : vector<1x2x256xf32> to vector<2x256xf32>
    %24 = arith.mulf %21, %23 : vector<2x256xf32>
    %25 = arith.addf %20, %24 : vector<2x256xf32>
    %c1_i32 = arith.constant 1 : i32
    %26 = tpu.dynamic_rotate %9 by %c1_i32 dim 1 : vector<2x256xf32>, i32 -> vector<2x256xf32>
    %c3 = arith.constant 3 : index
    %c0_16 = arith.constant 0 : index
    %c0_17 = arith.constant 0 : index
    %27 = vector.load %arg1[%c3, %c0_16, %c0_17] : memref<9x2x256xf32, #tpu.memory_space<vmem>>, vector<1x2x256xf32>
    %28 = vector.shape_cast %27 : vector<1x2x256xf32> to vector<2x256xf32>
    %29 = arith.mulf %26, %28 : vector<2x256xf32>
    %30 = arith.addf %25, %29 : vector<2x256xf32>
    %c4 = arith.constant 4 : index
    %c0_18 = arith.constant 0 : index
    %c0_19 = arith.constant 0 : index
    %31 = vector.load %arg1[%c4, %c0_18, %c0_19] : memref<9x2x256xf32, #tpu.memory_space<vmem>>, vector<1x2x256xf32>
    %32 = vector.shape_cast %31 : vector<1x2x256xf32> to vector<2x256xf32>
    %33 = arith.mulf %9, %32 : vector<2x256xf32>
    %34 = arith.addf %30, %33 : vector<2x256xf32>
    %c255_i32 = arith.constant 255 : i32
    %35 = tpu.dynamic_rotate %9 by %c255_i32 dim 1 : vector<2x256xf32>, i32 -> vector<2x256xf32>
    %c5 = arith.constant 5 : index
    %c0_20 = arith.constant 0 : index
    %c0_21 = arith.constant 0 : index
    %36 = vector.load %arg1[%c5, %c0_20, %c0_21] : memref<9x2x256xf32, #tpu.memory_space<vmem>>, vector<1x2x256xf32>
    %37 = vector.shape_cast %36 : vector<1x2x256xf32> to vector<2x256xf32>
    %38 = arith.mulf %35, %37 : vector<2x256xf32>
    %39 = arith.addf %34, %38 : vector<2x256xf32>
    %c241_i32 = arith.constant 241 : i32
    %40 = tpu.dynamic_rotate %9 by %c241_i32 dim 1 : vector<2x256xf32>, i32 -> vector<2x256xf32>
    %c6 = arith.constant 6 : index
    %c0_22 = arith.constant 0 : index
    %c0_23 = arith.constant 0 : index
    %41 = vector.load %arg1[%c6, %c0_22, %c0_23] : memref<9x2x256xf32, #tpu.memory_space<vmem>>, vector<1x2x256xf32>
    %42 = vector.shape_cast %41 : vector<1x2x256xf32> to vector<2x256xf32>
    %43 = arith.mulf %40, %42 : vector<2x256xf32>
    %44 = arith.addf %39, %43 : vector<2x256xf32>
    %c240_i32 = arith.constant 240 : i32
    %45 = tpu.dynamic_rotate %9 by %c240_i32 dim 1 : vector<2x256xf32>, i32 -> vector<2x256xf32>
    %c7 = arith.constant 7 : index
    %c0_24 = arith.constant 0 : index
    %c0_25 = arith.constant 0 : index
    %46 = vector.load %arg1[%c7, %c0_24, %c0_25] : memref<9x2x256xf32, #tpu.memory_space<vmem>>, vector<1x2x256xf32>
    %47 = vector.shape_cast %46 : vector<1x2x256xf32> to vector<2x256xf32>
    %48 = arith.mulf %45, %47 : vector<2x256xf32>
    %49 = arith.addf %44, %48 : vector<2x256xf32>
    %c239_i32 = arith.constant 239 : i32
    %50 = tpu.dynamic_rotate %9 by %c239_i32 dim 1 : vector<2x256xf32>, i32 -> vector<2x256xf32>
    %c8 = arith.constant 8 : index
    %c0_26 = arith.constant 0 : index
    %c0_27 = arith.constant 0 : index
    %51 = vector.load %arg1[%c8, %c0_26, %c0_27] : memref<9x2x256xf32, #tpu.memory_space<vmem>>, vector<1x2x256xf32>
    %52 = vector.shape_cast %51 : vector<1x2x256xf32> to vector<2x256xf32>
    %53 = arith.mulf %50, %52 : vector<2x256xf32>
    %54 = arith.addf %49, %53 : vector<2x256xf32>
    %55 = vector.extract_strided_slice %54 {offsets = [0, 0], sizes = [1, 256], strides = [1, 1]} : vector<2x256xf32> to vector<1x256xf32>
    %56 = vector.extract_strided_slice %54 {offsets = [1, 0], sizes = [1, 256], strides = [1, 1]} : vector<2x256xf32> to vector<1x256xf32>
    %57 = arith.addf %55, %56 : vector<1x256xf32>
    %58 = arith.negf %57 : vector<1x256xf32>
    %59 = math.exp %58 : vector<1x256xf32>
    %cst_28 = arith.constant 1.000000e+00 : f32
    %60 = vector.broadcast %cst_28 : f32 to vector<1x256xf32>
    %61 = arith.addf %60, %59 : vector<1x256xf32>
    %62 = arith.divf %60, %61 : vector<1x256xf32>
    %63 = vector.shape_cast %62 : vector<1x256xf32> to vector<1x1x1x256xf32>
    %64 = vector.broadcast %63 : vector<1x1x1x256xf32> to vector<1x4x8x256xf32>
    %65 = arith.mulf %0, %64 : vector<1x4x8x256xf32>
    %c0_29 = arith.constant 0 : index
    %c0_30 = arith.constant 0 : index
    %c0_31 = arith.constant 0 : index
    %c0_32 = arith.constant 0 : index
    %66 = vector.load %arg3[%c0_29, %c0_30, %c0_31, %c0_32] : memref<1x4x8x256xf32, #tpu.memory_space<vmem>>, vector<1x4x8x256xf32>
    tpu.vector_store %arg3[%c0_29, %c0_30, %c0_31, %c0_32], %65 {strides = array<i32>} : memref<1x4x8x256xf32, #tpu.memory_space<vmem>>, vector<1x4x8x256xf32>,
    return
  }
  func.func @transform_0(%arg0: i32) -> (i32, i32, i32) {
    %c0_i32 = arith.constant 0 : i32
    %c0_i32_0 = arith.constant 0 : i32
    %c0_i32_1 = arith.constant 0 : i32
    %c0_i32_2 = arith.constant 0 : i32
    return %c0_i32, %c0_i32_0, %c0_i32_1 : i32, i32, i32
  }
  func.func @transform_1(%arg0: i32) -> (i32, i32, i32, i32) {
    %c0_i32 = arith.constant 0 : i32
    %c0_i32_0 = arith.constant 0 : i32
    %c0_i32_1 = arith.constant 0 : i32
    %c0_i32_2 = arith.constant 0 : i32
    return %arg0, %c0_i32, %c0_i32_0, %c0_i32_1 : i32, i32, i32, i32
  }
  func.func @transform_2(%arg0: i32) -> (i32, i32, i32, i32) {
    %c0_i32 = arith.constant 0 : i32
    %c0_i32_0 = arith.constant 0 : i32
    %c0_i32_1 = arith.constant 0 : i32
    %c0_i32_2 = arith.constant 0 : i32
    return %arg0, %c0_i32, %c0_i32_0, %c0_i32_1 : i32, i32, i32, i32
  }
}

</mosaic_0001>

<llo_original>
// kernel: tpu_custom_call.1
$region0: #{tpu_custom_call.1}
  #allocation0 [shape = 'u32[]', space=smem, size = 0x4, offset = 0x4, fixed_abs, tag = 'smem constant byte address 0x4 - core index']
  #allocation1 [shape = 'u32[72,128]{1,0:T(1,128)}', space=vmem, size = 0x9000, scoped, tag = 'internal scratch']
  %s0 = inlined_call_operand.hbm [shape: f32[9,2,256], index: 0, kind: input, shape index: {}]
  %s1 = inlined_call_operand.hbm [shape: f32[2,4,8,256], index: 1, kind: input, shape index: {}]
  %s2 = inlined_call_operand.hbm [shape: f32[2,4,8,256], index: 2, kind: output, shape index: {}]
  %s3 = sld [smem:[#allocation0]]
  $region49: #{tpu_custom_call.1} parent=0
    _
  %s5 = ssub.s32 1, %s3
  %s6 = scalar_select 0, %s5, %s3
  $region1: #{tpu_custom_call.1} parent=0
    #allocation2 [shape = 'u8[18432]{0}', space=vmem, size = 0x4800, scoped, tag = 'input window, operand 0, single buffered']
    #allocation3 [shape = 's32[2]{0}', space=sflag, size = 0x8, scoped, tag = 'scoped memory for tpu_custom_call.1']
    #allocation4 [shape = 's32[2]{0}', space=sflag, size = 0x8, scoped, tag = 'scoped memory for tpu_custom_call.1']
    #allocation5 [shape = 'u8[65536]{0}', space=vmem, size = 0x10000, scoped, tag = 'input window, operand 1']
    #allocation6 [shape = 's32[2]{0}', space=sflag, size = 0x8, scoped, tag = 'scoped memory for tpu_custom_call.1']
    #allocation7 [shape = 'u8[65536]{0}', space=vmem, size = 0x10000, scoped, tag = 'output window, operand 0']
    %7 = vsyncpa [#allocation3], 0
    %8 = vsyncpa [#allocation6], 0
    %s9 = scalar_lea.sflag [#allocation6], 1
    %10 = vsyncpa %s9, 0
    %11 = vsyncpa [#allocation4], 0
    %s12 = scalar_lea.sflag [#allocation4], 1
    %13 = vsyncpa %s12, 0
    loop: start=0, step=1, limit=4
    $region2: #{tpu_custom_call.1} parent=1 // loop_pre_header
      _
    $region3: #{tpu_custom_call.1} parent=1 // loop_header
      %s15 = sphi 0, %s19
      %p16 = scmp.ge.s32.totalorder %s15, 4
      %s23 = sphi 0, %s23
      %s25 = sphi 0, %s23
      %s26 = sphi 0, %s25
      %s40 = sphi 0, %s26
      %s46 = sphi 0, %s48
      %s49 = sphi 0, %s46
      %s50 = sphi 0, %s49
      %s66 = sphi 0, %s50
      %s72 = sphi 0, %s74
      %s75 = sphi 0, %s72
      %s76 = sphi 0, %s75
      %s92 = sphi 0, %s76
    $region4: #{tpu_custom_call.1} parent=1 // loop_header_branch
      %18 = sbr.rel (%p16) target = $region8
    $region5: #{tpu_custom_call.1} parent=1 // loop_body
      %s20 = ssub.s32 %s15, 1
      %s21 = ssub.s32 %s15, 2
      %s22 = sadd.s32 %s15, 1
      %s24 = sadd.s32 %s23, 1
      %p27 = scmp.eq.s32.totalorder %s15, 1
      %p28 = scmp.ne.s32.totalorder %s23, %s25
      %p29 = scmp.eq.s32.totalorder %s15, 0
      %p30 = por %p28, %p29
      %p31 = scmp.ne.s32.totalorder %s23, %s25
      %p32 = scmp.eq.s32.totalorder %s20, 1
      %p33 = por %p31, %p32
      %p34 = scmp.ne.s32.totalorder %s25, %s26
      %p35 = scmp.eq.s32.totalorder %s20, 0
      %p36 = por %p34, %p35
      %p37 = scmp.ne.s32.totalorder %s25, %s26
      %p38 = scmp.eq.s32.totalorder %s21, 1
      %p39 = por %p37, %p38
      %p41 = scmp.ne.s32.totalorder %s26, %s40
      %p42 = scmp.eq.s32.totalorder %s21, 0
      %p43 = por %p41, %p42
      %s44 = ssub.s32 %s15, %s22
      %p45 = scmp.eq.s32.totalorder %s44, 0
      %s47 = sadd.s32 %s46, 1
      %s48 = scalar_select %p45, %s46, %s47
      %p51 = pneg %p45
      %p52 = scmp.eq.s32.totalorder %s15, 1
      %p53 = por %p51, %p52
      %p54 = scmp.ne.s32.totalorder %s46, %s49
      %p55 = scmp.eq.s32.totalorder %s15, 0
      %p56 = por %p54, %p55
      %p57 = scmp.ne.s32.totalorder %s46, %s49
      %p58 = scmp.eq.s32.totalorder %s20, 1
      %p59 = por %p57, %p58
      %p60 = scmp.ne.s32.totalorder %s49, %s50
      %p61 = scmp.eq.s32.totalorder %s20, 0
      %p62 = por %p60, %p61
      %p63 = scmp.ne.s32.totalorder %s49, %s50
      %p64 = scmp.eq.s32.totalorder %s21, 1
      %p65 = por %p63, %p64
      %p67 = scmp.ne.s32.totalorder %s50, %s66
      %p68 = scmp.eq.s32.totalorder %s21, 0
      %p69 = por %p67, %p68
      %s70 = ssub.s32 %s15, %s22
      %p71 = scmp.eq.s32.totalorder %s70, 0
      %s73 = sadd.s32 %s72, 1
      %s74 = scalar_select %p71, %s72, %s73
      %p77 = pneg %p71
      %p78 = scmp.eq.s32.totalorder %s15, 1
      %p79 = por %p77, %p78
      %p80 = scmp.ne.s32.totalorder %s72, %s75
      %p81 = scmp.eq.s32.totalorder %s15, 0
      %p82 = por %p80, %p81
      %p83 = scmp.ne.s32.totalorder %s72, %s75
      %p84 = scmp.eq.s32.totalorder %s20, 1
      %p85 = por %p83, %p84
      %p86 = scmp.ne.s32.totalorder %s75, %s76
      %p87 = scmp.eq.s32.totalorder %s20, 0
      %p88 = por %p86, %p87
      %p89 = scmp.ne.s32.totalorder %s75, %s76
      %p90 = scmp.eq.s32.totalorder %s21, 1
      %p91 = por %p89, %p90
      %p93 = scmp.ne.s32.totalorder %s76, %s92
      %p94 = scmp.eq.s32.totalorder %s21, 0
      %p95 = por %p93, %p94
      %p96 = scmp.le.s32.totalorder 1, %s15
      %p97 = scmp.lt.s32.totalorder %s15, 3
      %p98 = pnand %p96, %p97
      %p99 = pneg %p98
      // Predicated region
      $region9: #{tpu_custom_call.1} parent=5 // pred_check
        _
      $region10: #{tpu_custom_call.1} parent=5 // pred_check_branch
        %101 = sbr.rel (%p98) target = $region12
      $region11: #{tpu_custom_call.1} parent=5 // pred_region
        %s102 = ssub.s32 %s15, 1
        // Predicated region
        $region13: #{tpu_custom_call.1} parent=11 // pred_check
          %p103 = pneg %p36
        $region14: #{tpu_custom_call.1} parent=11 // pred_check_branch
          %105 = sbr.rel (%p103) target = $region16
        $region15: #{tpu_custom_call.1} parent=11 // pred_region
          %107 = vsyncadd [#allocation3], 0
          %s108 = sshll.u32 %s0, 4
          %s109 = int_to_ptr.hbm [resolvable:$true] %s108
          %s110 = sshll.u32 [#allocation2], 4
          %s111 = int_to_ptr.vmem [resolvable:$true] %s110
          %116 = dma.hbm_to_vmem [thread:$0]  %s109, 576, %s111, [#allocation3], 64, 64, 4
        $region16: #{tpu_custom_call.1} parent=11 // pred_fallthru
          _
      $region12: #{tpu_custom_call.1} parent=5 // pred_fallthru
        _
      %p117 = scmp.lt.s32.totalorder %s15, 2
      // Predicated region
      $region17: #{tpu_custom_call.1} parent=5 // pred_check
        %p118 = pneg %p117
      $region18: #{tpu_custom_call.1} parent=5 // pred_check_branch
        %120 = sbr.rel (%p118) target = $region20
      $region19: #{tpu_custom_call.1} parent=5 // pred_region
        // Predicated region
        $region21: #{tpu_custom_call.1} parent=19 // pred_check
          %p121 = pneg %p56
        $region22: #{tpu_custom_call.1} parent=19 // pred_check_branch
          %123 = sbr.rel (%p121) target = $region24
        $region23: #{tpu_custom_call.1} parent=19 // pred_region
          %s124 = sand.u32 %s46, 1
          %s125 = scalar_lea.sflag [#allocation6], %s124
          %s126 = sand.u32 %s46, 1
          %s127 = smul.addr %s126, 64
          %s128 = scalar_lea.vmem [#allocation5], %s127
          %130 = vsyncadd %s125, 0
          %s131 = smul.addr %s15, 8
          %s132 = smul.addr %s131, 8
          %s133 = scalar_lea.hbm %s1, %s132
          %s134 = sshll.u32 %s133, 4
          %s135 = int_to_ptr.hbm [resolvable:$true] %s134
          %s136 = sshll.u32 %s128, 4
          %s137 = int_to_ptr.vmem [resolvable:$true] %s136
          %142 = dma.hbm_to_vmem [thread:$0]  %s135, 1024, %s137, %s125, 256, 256, 16
        $region24: #{tpu_custom_call.1} parent=19 // pred_fallthru
          _
      $region20: #{tpu_custom_call.1} parent=5 // pred_fallthru
        _
      %p143 = scmp.le.s32.totalorder 1, %s15
      %p144 = scmp.lt.s32.totalorder %s15, 3
      %p145 = pnand %p143, %p144
      %p146 = pneg %p145
      // Predicated region
      $region25: #{tpu_custom_call.1} parent=5 // pred_check
        _
      $region26: #{tpu_custom_call.1} parent=5 // pred_check_branch
        %148 = sbr.rel (%p145) target = $region28
      $region27: #{tpu_custom_call.1} parent=5 // pred_region
        %s149 = ssub.s32 %s15, 1
        // Predicated region
        $region29: #{tpu_custom_call.1} parent=27 // pred_check
          %p150 = pneg %p36
        $region30: #{tpu_custom_call.1} parent=27 // pred_check_branch
          %152 = sbr.rel (%p150) target = $region32
        $region31: #{tpu_custom_call.1} parent=27 // pred_region
          %154 = dma.done [#allocation3], 576
        $region32: #{tpu_custom_call.1} parent=27 // pred_fallthru
          _
        %s155 = sand.u32 %s49, 1
        %s156 = scalar_lea.sflag [#allocation6], %s155
        %s157 = sand.u32 %s49, 1
        %s158 = smul.addr %s157, 64
        %s159 = scalar_lea.vmem [#allocation5], %s158
        // Predicated region
        $region33: #{tpu_custom_call.1} parent=27 // pred_check
          %p160 = pneg %p62
        $region34: #{tpu_custom_call.1} parent=27 // pred_check_branch
          %162 = sbr.rel (%p160) target = $region36
        $region35: #{tpu_custom_call.1} parent=27 // pred_region
          %164 = dma.done %s156, 1024
        $region36: #{tpu_custom_call.1} parent=27 // pred_fallthru
          _
        %p165 = pneg %p36
        %p166 = pneg %p33
        %s167 = sand.u32 %s49, 1
        %s168 = scalar_lea.sflag [#allocation6], %s167
        %s169 = sand.u32 %s49, 1
        %s170 = smul.addr %s169, 64
        %s171 = scalar_lea.vmem [#allocation5], %s170
        %p172 = pneg %p62
        %p173 = pneg %p59
        %p174 = pneg %p88
        %p175 = pneg %p85
        %s176 = sand.u32 %s75, 1
        %s177 = scalar_lea.sflag [#allocation4], %s176
        %s178 = sand.u32 %s75, 1
        %s179 = smul.addr %s178, 64
        %s180 = scalar_lea.vmem [#allocation7], %s179
        %v181 = vld [vmem:[%s159] sm:$0xff]
        %v182 = vld [vmem:[%s159 + $0x8] sm:$0xff]
        %v183 = vld [vmem:[%s159 + $0x10] sm:$0xff]
        %v184 = vld [vmem:[%s159 + $0x18] sm:$0xff]
        %v185 = vld [vmem:[%s159 + $0x20] sm:$0xff]
        %v186 = vld [vmem:[%s159 + $0x28] sm:$0xff]
        %v187 = vld [vmem:[%s159 + $0x30] sm:$0xff]
        %v188 = vld [vmem:[%s159 + $0x38] sm:$0xff]
        %v189 = vadd.f32 %v181, %v183
        %v190 = vadd.f32 %v189, %v185
        %v191 = vadd.f32 %v190, %v187
        %v192 = vadd.f32 %v182, %v184
        %v193 = vadd.f32 %v192, %v186
        %v194 = vadd.f32 %v193, %v188
        %v195 = vrot.slane %v191, 4
        %v196 = vadd.f32 %v191, %v195
        %v197 = vrot.slane %v196, 2
        %v198 = vadd.f32 %v196, %v197
        %v199 = vrot.slane %v198, 1
        %v200 = vadd.f32 %v198, %v199
        %v201 = vrot.slane %v194, 4
        %v202 = vadd.f32 %v194, %v201
        %v203 = vrot.slane %v202, 2
        %v204 = vadd.f32 %v202, %v203
        %v205 = vrot.slane %v204, 1
        %v206 = vadd.f32 %v204, %v205
        %v207 = vmul.f32 %v200, 0.03125
        %v208 = vmul.f32 %v206, 0.03125
        %v209 = vmax.f32 %v181, %v185
        %v210 = vmax.f32 %v183, %v187
        %v211 = vmax.f32 %v209, %v210
        %v212 = vmax.f32 %v182, %v186
        %v213 = vmax.f32 %v184, %v188
        %v214 = vmax.f32 %v212, %v213
        %v215 = vrot.slane %v211, 4
        %v216 = vadd.f32 %v211, %v215
        %v217 = vrot.slane %v216, 2
        %v218 = vadd.f32 %v216, %v217
        %v219 = vrot.slane %v218, 1
        %v220 = vadd.f32 %v218, %v219
        %v221 = vrot.slane %v214, 4
        %v222 = vadd.f32 %v214, %v221
        %v223 = vrot.slane %v222, 2
        %v224 = vadd.f32 %v222, %v223
        %v225 = vrot.slane %v224, 1
        %v226 = vadd.f32 %v224, %v225
        %v227 = vmul.f32 %v220, 0.125
        %v228 = vmul.f32 %v226, 0.125
        %vm229 = vcmask 1040384
        %v230 = vsel %vm229, %v207, %v227
        %v231 = vsel %vm229, %v208, %v228
        %232 = vrot.lane.b32.xlu0 %v230, 17
        %v233 = vpop.permute.xlu0 %232
        %234 = vrot.lane.b32.xlu0 %v231, 17
        %v235 = vpop.permute.xlu0 %234
        %v236 = vlaneseq
        %v237 = vand.u32 %v236, 127
        %vm238 = vcmp.lt.s32.totalorder %v237, 17
        %v239 = vsel %vm238, %v233, %v235
        %v240 = vsel %vm238, %v235, %v233
        %v241 = vld [vmem:[#allocation2] sm:$0xf]
        %243 = vst [vmem:[#allocation1] ss:$4 sm:$0xff] %v241
        %v244 = vld.sshfl [vmem:[#allocation1] sm:$0xff pattern:$0x73625140]
        %v245 = vld.sshfl [vmem:[#allocation1 + $0x8] sm:$0xff pattern:$0x73625140]
        %v248 = vmul.f32 %v240, %v244
        %v249 = vmul.f32 %v239, %v245
        %v250 = vadd.f32 %v248, 0.0
        %v251 = vadd.f32 %v249, 0.0
        %252 = vrot.lane.b32.xlu0 %v230, 16
        %v253 = vpop.permute.xlu0 %252
        %254 = vrot.lane.b32.xlu0 %v231, 16
        %v255 = vpop.permute.xlu0 %254
        %vm256 = vcmp.lt.s32.totalorder %v237, 16
        %v257 = vsel %vm256, %v253, %v255
        %v258 = vsel %vm256, %v255, %v253
        %s259 = scalar_lea.vmem [#allocation2], 4
        %v260 = vld [vmem:[%s259] sm:$0xf]
        %262 = vst [vmem:[#allocation1] ss:$4 sm:$0xff] %v260
        %v263 = vld.sshfl [vmem:[#allocation1] sm:$0xff pattern:$0x73625140]
        %v264 = vld.sshfl [vmem:[#allocation1 + $0x8] sm:$0xff pattern:$0x73625140]
        %v267 = vmul.f32 %v258, %v263
        %v268 = vmul.f32 %v257, %v264
        %v269 = vadd.f32 %v250, %v267
        %v270 = vadd.f32 %v251, %v268
        %271 = vrot.lane.b32.xlu0 %v230, 15
        %v272 = vpop.permute.xlu0 %271
        %273 = vrot.lane.b32.xlu0 %v231, 15
        %v274 = vpop.permute.xlu0 %273
        %vm275 = vcmp.lt.s32.totalorder %v237, 15
        %v276 = vsel %vm275, %v272, %v274
        %v277 = vsel %vm275, %v274, %v272
        %s278 = scalar_lea.vmem [#allocation2], 8
        %v279 = vld [vmem:[%s278] sm:$0xf]
        %281 = vst [vmem:[#allocation1] ss:$4 sm:$0xff] %v279
        %v282 = vld.sshfl [vmem:[#allocation1] sm:$0xff pattern:$0x73625140]
        %v283 = vld.sshfl [vmem:[#allocation1 + $0x8] sm:$0xff pattern:$0x73625140]
        %v286 = vmul.f32 %v277, %v282
        %v287 = vmul.f32 %v276, %v283
        %v288 = vadd.f32 %v269, %v286
        %v289 = vadd.f32 %v270, %v287
        %290 = vrot.lane.b32.xlu0 %v230, 1
        %v291 = vpop.permute.xlu0 %290
        %292 = vrot.lane.b32.xlu0 %v231, 1
        %v293 = vpop.permute.xlu0 %292
        %vm294 = vcmp.lt.s32.totalorder %v237, 1
        %v295 = vsel %vm294, %v291, %v293
        %v296 = vsel %vm294, %v293, %v291
        %s297 = scalar_lea.vmem [#allocation2], 12
        %v298 = vld [vmem:[%s297] sm:$0xf]
        %300 = vst [vmem:[#allocation1] ss:$4 sm:$0xff] %v298
        %v301 = vld.sshfl [vmem:[#allocation1] sm:$0xff pattern:$0x73625140]
        %v302 = vld.sshfl [vmem:[#allocation1 + $0x8] sm:$0xff pattern:$0x73625140]
        %v305 = vmul.f32 %v296, %v301
        %v306 = vmul.f32 %v295, %v302
        %v307 = vadd.f32 %v288, %v305
        %v308 = vadd.f32 %v289, %v306
        %s309 = scalar_lea.vmem [#allocation2], 16
        %v310 = vld [vmem:[%s309] sm:$0xf]
        %312 = vst [vmem:[#allocation1] ss:$4 sm:$0xff] %v310
        %v313 = vld.sshfl [vmem:[#allocation1] sm:$0xff pattern:$0x73625140]
        %v314 = vld.sshfl [vmem:[#allocation1 + $0x8] sm:$0xff pattern:$0x73625140]
        %v317 = vmul.f32 %v230, %v313
        %v318 = vmul.f32 %v231, %v314
        %v319 = vadd.f32 %v307, %v317
        %v320 = vadd.f32 %v308, %v318
        %321 = vrot.lane.b32.xlu0 %v230, 127
        %v322 = vpop.permute.xlu0 %321
        %323 = vrot.lane.b32.xlu0 %v231, 127
        %v324 = vpop.permute.xlu0 %323
        %vm325 = vcmp.lt.s32.totalorder %v237, 127
        %v326 = vsel %vm325, %v322, %v324
        %v327 = vsel %vm325, %v324, %v322
        %s328 = scalar_lea.vmem [#allocation2], 20
        %v329 = vld [vmem:[%s328] sm:$0xf]
        %331 = vst [vmem:[#allocation1] ss:$4 sm:$0xff] %v329
        %v332 = vld.sshfl [vmem:[#allocation1] sm:$0xff pattern:$0x73625140]
        %v333 = vld.sshfl [vmem:[#allocation1 + $0x8] sm:$0xff pattern:$0x73625140]
        %v336 = vmul.f32 %v326, %v332
        %v337 = vmul.f32 %v327, %v333
        %v338 = vadd.f32 %v319, %v336
        %v339 = vadd.f32 %v320, %v337
        %340 = vrot.lane.b32.xlu0 %v230, 113
        %v341 = vpop.permute.xlu0 %340
        %342 = vrot.lane.b32.xlu0 %v231, 113
        %v343 = vpop.permute.xlu0 %342
        %vm344 = vcmp.lt.s32.totalorder %v237, 113
        %v345 = vsel %vm344, %v341, %v343
        %v346 = vsel %vm344, %v343, %v341
        %s347 = scalar_lea.vmem [#allocation2], 24
        %v348 = vld [vmem:[%s347] sm:$0xf]
        %350 = vst [vmem:[#allocation1] ss:$4 sm:$0xff] %v348
        %v351 = vld.sshfl [vmem:[#allocation1] sm:$0xff pattern:$0x73625140]
        %v352 = vld.sshfl [vmem:[#allocation1 + $0x8] sm:$0xff pattern:$0x73625140]
        %v355 = vmul.f32 %v345, %v351
        %v356 = vmul.f32 %v346, %v352
        %v357 = vadd.f32 %v338, %v355
        %v358 = vadd.f32 %v339, %v356
        %359 = vrot.lane.b32.xlu0 %v230, 112
        %v360 = vpop.permute.xlu0 %359
        %361 = vrot.lane.b32.xlu0 %v231, 112
        %v362 = vpop.permute.xlu0 %361
        %vm363 = vcmp.lt.s32.totalorder %v237, 112
        %v364 = vsel %vm363, %v360, %v362
        %v365 = vsel %vm363, %v362, %v360
        %s366 = scalar_lea.vmem [#allocation2], 28
        %v367 = vld [vmem:[%s366] sm:$0xf]
        %369 = vst [vmem:[#allocation1] ss:$4 sm:$0xff] %v367
        %v370 = vld.sshfl [vmem:[#allocation1] sm:$0xff pattern:$0x73625140]
        %v371 = vld.sshfl [vmem:[#allocation1 + $0x8] sm:$0xff pattern:$0x73625140]
        %v374 = vmul.f32 %v364, %v370
        %v375 = vmul.f32 %v365, %v371
        %v376 = vadd.f32 %v357, %v374
        %v377 = vadd.f32 %v358, %v375
        %378 = vrot.lane.b32.xlu0 %v230, 111
        %v379 = vpop.permute.xlu0 %378
        %380 = vrot.lane.b32.xlu0 %v231, 111
        %v381 = vpop.permute.xlu0 %380
        %vm382 = vcmp.lt.s32.totalorder %v237, 111
        %v383 = vsel %vm382, %v379, %v381
        %v384 = vsel %vm382, %v381, %v379
        %s385 = scalar_lea.vmem [#allocation2], 32
        %v386 = vld [vmem:[%s385] sm:$0xf]
        %388 = vst [vmem:[#allocation1] ss:$4 sm:$0xff] %v386
        %v389 = vld.sshfl [vmem:[#allocation1] sm:$0xff pattern:$0x73625140]
        %v390 = vld.sshfl [vmem:[#allocation1 + $0x8] sm:$0xff pattern:$0x73625140]
        %v393 = vmul.f32 %v383, %v389
        %v394 = vmul.f32 %v384, %v390
        %v395 = vadd.f32 %v376, %v393
        %v396 = vadd.f32 %v377, %v394
        %v399 = vrot.slane %v395, 1
        %v400 = vrot.slane %v396, 1
        %v403 = vadd.f32 %v395, %v399
        %v404 = vadd.f32 %v396, %v400
        %v405 = vxor.u32 %v403, 2147483648
        %v406 = vxor.u32 %v404, 2147483648
        %v407 = vmul.f32 %v405, 1.442695
        %v408 = vpow.pop %v407
        %v409 = vmul.f32 %v406, 1.442695
        %v410 = vpow.pop %v409
        %v411 = vadd.f32 %v408, 1.0
        %v412 = vadd.f32 %v410, 1.0
        %v413 = vrcp.pop %v411
        %v414 = vmul.f32 %v411, %v413
        %v415 = vsub.f32 1.0, %v414
        %v416 = vmul.f32 %v413, %v415
        %v417 = vadd.f32 %v413, %v416
        %vm418 = vweird.f32 %v411
        %vm419 = vweird.f32 %v413
        %vm420 = vmor %vm418, %vm419
        %v421 = vsel %vm420, %v413, %v417
        %v422 = vand.u32 2147483647, %v411
        %vm423 = vcmp.eq.f32.partialorder %v422, 8.507059e+37
        %v424 = vand.u32 %v411, 2147483648
        %v425 = vor.u32 1.1754944e-38, %v424
        %v426 = vsel %vm423, %v425, %v421
        %v427 = vmul.f32 1.0, %v426
        %v428 = vrcp.pop %v412
        %v429 = vmul.f32 %v412, %v428
        %v430 = vsub.f32 1.0, %v429
        %v431 = vmul.f32 %v428, %v430
        %v432 = vadd.f32 %v428, %v431
        %vm433 = vweird.f32 %v412
        %vm434 = vweird.f32 %v428
        %vm435 = vmor %vm433, %vm434
        %v436 = vsel %vm435, %v428, %v432
        %v437 = vand.u32 2147483647, %v412
        %vm438 = vcmp.eq.f32.partialorder %v437, 8.507059e+37
        %v439 = vand.u32 %v412, 2147483648
        %v440 = vor.u32 1.1754944e-38, %v439
        %v441 = vsel %vm438, %v440, %v436
        %v442 = vmul.f32 1.0, %v441
        %v443 = vperm.slane %v427, 0
        %v444 = vperm.slane %v442, 0
        %v445 = vmul.f32 %v181, %v443
        %v446 = vmul.f32 %v182, %v444
        %v447 = vmul.f32 %v183, %v443
        %v448 = vmul.f32 %v184, %v444
        %v449 = vmul.f32 %v185, %v443
        %v450 = vmul.f32 %v186, %v444
        %v451 = vmul.f32 %v187, %v443
        %v452 = vmul.f32 %v188, %v444
        %453 = vst [vmem:[%s180] sm:$0xff] %v445
        %454 = vst [vmem:[%s180 + $0x8] sm:$0xff] %v446
        %455 = vst [vmem:[%s180 + $0x10] sm:$0xff] %v447
        %456 = vst [vmem:[%s180 + $0x18] sm:$0xff] %v448
        %457 = vst [vmem:[%s180 + $0x20] sm:$0xff] %v449
        %458 = vst [vmem:[%s180 + $0x28] sm:$0xff] %v450
        %459 = vst [vmem:[%s180 + $0x30] sm:$0xff] %v451
        %460 = vst [vmem:[%s180 + $0x38] sm:$0xff] %v452
        %s461 = sand.u32 %s75, 1
        %s462 = scalar_lea.sflag [#allocation4], %s461
        %s463 = sand.u32 %s75, 1
        %s464 = smul.addr %s463, 64
        %s465 = scalar_lea.vmem [#allocation7], %s464
        // Predicated region
        $region37: #{tpu_custom_call.1} parent=27 // pred_check
          %p466 = pneg %p85
        $region38: #{tpu_custom_call.1} parent=27 // pred_check_branch
          %468 = sbr.rel (%p466) target = $region40
        $region39: #{tpu_custom_call.1} parent=27 // pred_region
          %470 = vsyncadd %s462, 0
          %s471 = smul.addr %s20, 8
          %s472 = smul.addr %s471, 8
          %s473 = scalar_lea.hbm %s2, %s472
          %s474 = sshll.u32 %s465, 4
          %s475 = int_to_ptr.vmem [resolvable:$true] %s474
          %s476 = sshll.u32 %s473, 4
          %s477 = int_to_ptr.hbm [resolvable:$true] %s476
          %482 = dma.vmem_to_hbm [thread:$0]  %s475, 1024, %s477, %s462, 256, 256, 16
        $region40: #{tpu_custom_call.1} parent=27 // pred_fallthru
          _
      $region28: #{tpu_custom_call.1} parent=5 // pred_fallthru
        _
      %p483 = scmp.le.s32.totalorder 2, %s15
      // Predicated region
      $region41: #{tpu_custom_call.1} parent=5 // pred_check
        %p484 = pneg %p483
      $region42: #{tpu_custom_call.1} parent=5 // pred_check_branch
        %486 = sbr.rel (%p484) target = $region44
      $region43: #{tpu_custom_call.1} parent=5 // pred_region
        %s487 = ssub.s32 %s15, 2
        // Predicated region
        $region45: #{tpu_custom_call.1} parent=43 // pred_check
          %p488 = pneg %p91
        $region46: #{tpu_custom_call.1} parent=43 // pred_check_branch
          %490 = sbr.rel (%p488) target = $region48
        $region47: #{tpu_custom_call.1} parent=43 // pred_region
          %s491 = sand.u32 %s76, 1
          %s492 = scalar_lea.sflag [#allocation4], %s491
          %s493 = sand.u32 %s76, 1
          %s494 = smul.addr %s493, 64
          %s495 = scalar_lea.vmem [#allocation7], %s494
          %497 = dma.done %s492, 1024
        $region48: #{tpu_custom_call.1} parent=43 // pred_fallthru
          _
      $region44: #{tpu_custom_call.1} parent=5 // pred_fallthru
        _
    $region6: #{tpu_custom_call.1} parent=1 // loop_footer
      %s19 = sadd.s32 1, %s15
    $region7: #{tpu_custom_call.1} parent=1 // loop_footer_branch
      %14 = sbr.rel target = $region3
    $region8: #{tpu_custom_call.1} parent=1 // loop_exit
      _
    %498 = vsyncpa [#allocation3], 1
    %s499 = scalar_lea.sflag [#allocation3], 1
    %500 = vsyncpa %s499, 1
    %501 = vsyncpa [#allocation6], 1
    %s502 = scalar_lea.sflag [#allocation6], 1
    %503 = vsyncpa %s502, 1
    %504 = vsyncpa [#allocation4], 1
    %s505 = scalar_lea.sflag [#allocation4], 1
    %506 = vsyncpa %s505, 1

</llo_original>
